<compile_context>
chip_gen: v7x
topology: tpu7x:2x2x1
jax: 0.10.0
libtpu: 0.0.40
codegen_flags: <defaults>
</compile_context>

<pallas_src>
import functools

import jax
import jax.numpy as jnp
from jax import lax
from jax.experimental import pallas as pl
from jax.experimental.pallas import tpu as pltpu

_LANE = 128
_SUBLANE = 8


def _round_up(x: int, m: int) -> int:
    return ((x + m - 1) // m) * m


# ----------------------------------------------------------------------------
# Single-step kernel: act = amp * sin(omega_dt * step + phase), step in SMEM.
# Also emits step+1 so the counter stays device-resident (no H2D per call).
# ----------------------------------------------------------------------------
@functools.lru_cache(maxsize=None)
def _single_step_fn(d: int, d_pad8: int):
    def kernel(step_ref, params_ref, act_ref, step_next_ref):
        # step_ref: (1,) i32 SMEM; params_ref: (3*d_pad8, 1) f32 VMEM
        # act_ref: (d_pad8, 1) f32 VMEM; step_next_ref: (1,) i32 SMEM
        amp = params_ref[0:d_pad8, :]
        omega_dt = params_ref[d_pad8:2 * d_pad8, :]
        phase = params_ref[2 * d_pad8:3 * d_pad8, :]
        step_f = step_ref[0].astype(jnp.float32)
        act_ref[...] = amp * jnp.sin(omega_dt * step_f + phase)
        step_next_ref[0] = step_ref[0] + 1

    call = pl.pallas_call(
        kernel,
        out_shape=(
            jax.ShapeDtypeStruct((d_pad8, 1), jnp.float32),
            jax.ShapeDtypeStruct((1,), jnp.int32),
        ),
        in_specs=[
            pl.BlockSpec(memory_space=pltpu.MemorySpace.SMEM),   # step
            pl.BlockSpec(memory_space=pltpu.MemorySpace.VMEM),   # packed params
        ],
        out_specs=(
            pl.BlockSpec(memory_space=pltpu.MemorySpace.VMEM),   # act column
            pl.BlockSpec(memory_space=pltpu.MemorySpace.SMEM),   # step + 1
        ),
    )

    def fwd(step, params):
        act_p, step_next = call(step, params)
        return act_p[:d, 0], step_next  # (D,), (1,)

    return jax.jit(fwd)


# ----------------------------------------------------------------------------
# Batched rollout kernel: act[:, i] = amp * sin(omega_dt * (step0 + i) + phase)
# Output layout is (d_pad8, T) -> time on lanes, action dim on sublanes.
# Independent grid iterations ("parallel"), scalar-prefetched step0.
# ----------------------------------------------------------------------------
@functools.lru_cache(maxsize=None)
def _rollout_fn(d: int, d_pad8: int, t_tile: int, num_steps: int):
    n_tiles = pl.cdiv(_round_up(num_steps, _LANE), t_tile)
    t_total = n_tiles * t_tile

    def kernel(step0_ref, params_ref, act_ref):
        # step0_ref: (1,) i32 scalar-prefetch (SMEM)
        # params_ref: (3*d_pad8, 1) f32 VMEM
        # act_ref: (d_pad8, t_tile) f32 VMEM
        i = pl.program_id(0)
        base = step0_ref[0] + i * t_tile
        amp = params_ref[0:d_pad8, :]
        omega_dt = params_ref[d_pad8:2 * d_pad8, :]
        phase = params_ref[2 * d_pad8:3 * d_pad8, :]
        col = lax.broadcasted_iota(jnp.int32, (d_pad8, t_tile), 1)
        step_f = (base + col).astype(jnp.float32)
        act_ref[...] = amp * jnp.sin(omega_dt * step_f + phase)

    n_elem = t_total * d_pad8
    call = pl.pallas_call(
        kernel,
        out_shape=jax.ShapeDtypeStruct((d_pad8, t_total), jnp.float32),
        grid_spec=pltpu.PrefetchScalarGridSpec(
            num_scalar_prefetch=1,
            grid=(n_tiles,),
            in_specs=[
                pl.BlockSpec((3 * d_pad8, 1), lambda i, s: (0, 0)),
            ],
            out_specs=pl.BlockSpec((d_pad8, t_tile), lambda i, s: (0, i)),
        ),
        compiler_params=pltpu.CompilerParams(
            dimension_semantics=("parallel",),
        ),
        cost_estimate=pl.CostEstimate(
            flops=3 * n_elem,
            transcendentals=n_elem,
            bytes_accessed=4 * n_elem + 4 * 3 * d_pad8,
        ),
    )

    def rollout(step0, params):
        act_p = call(step0, params)                 # (d_pad8, t_total)
        acts = act_p[:d, :num_steps].T              # (num_steps, D)
        return acts, step0 + jnp.int32(num_steps)

    return jax.jit(rollout)


class TraceableTimePolicyPallas:
    """Functional-state mirror of Pyrado's TraceableTimePolicy (Pallas/TPU)."""

    name: str = "time"

    def __init__(self, input_size: int, output_size: int, amp, omega, phase, dt: float):
        self.input_size = input_size      # obs_space.flat_dim (unused by forward)
        self.output_size = output_size    # act_space.flat_dim
        self.dt = float(dt)

        d = int(output_size)
        d_pad8 = _round_up(max(d, 1), _SUBLANE)
        self._d = d
        self._d_pad8 = d_pad8

        def col(x):
            x = jnp.asarray(x, jnp.float32).reshape(d, 1)
            return jnp.zeros((d_pad8, 1), jnp.float32).at[:d, :].set(x)

        # Packed params: rows [0:p)=amp, [p:2p)=omega*dt, [2p:3p)=phase.
        # Padded rows have amp == 0, so their sin output is harmlessly 0.
        self._params = jnp.concatenate(
            [col(amp), col(omega) * jnp.float32(self.dt), col(phase)], axis=0
        )  # (3*d_pad8, 1)

        # Step counter: device-resident int32 for kernels, host mirror for t_curr.
        self._step_dev = jnp.zeros((1,), jnp.int32)
        self._step_host = 0

        # Build/compile once per shape; cached across instances too.
        self._fwd = _single_step_fn(d, d_pad8)

    @property
    def t_curr(self) -> float:
        return self._step_host * self.dt

    def reset(self):
        self._step_dev = jnp.zeros((1,), jnp.int32)
        self._step_host = 0

    def forward(self, obs=None):
        # obs is accepted but ignored, exactly like the PyTorch module.
        act, self._step_dev = self._fwd(self._step_dev, self._params)
        self._step_host += 1
        return act  # (output_size,)

    def rollout(self, num_steps: int, t_tile: int = None):
        """Evaluate `num_steps` consecutive forward() calls in ONE kernel launch.

        Advances the internal time by num_steps*dt, like num_steps forward() calls.
        """
        num_steps = int(num_steps)
        if t_tile is None:
            # >= 2 roughly balanced tiles when possible (v7x 2-TC sharding),
            # capped at 1024 lanes per tile (per-grid-step overhead amortized).
            t_tile = max(_LANE, min(1024, _round_up(pl.cdiv(num_steps, 2), _LANE)))
        t_tile = _round_up(int(t_tile), _LANE)
        fn = _rollout_fn(self._d, self._d_pad8, t_tile, num_steps)
        acts, self._step_dev = fn(self._step_dev, self._params)
        self._step_host += num_steps
        return acts  # (num_steps, output_size)


if __name__ == "__main__":
    key = jax.random.PRNGKey(0)
    k_amp, k_omega, k_phase = jax.random.split(key, 3)

    input_size = 16   # env obs flat dim (unused by forward)
    output_size = 8   # env act flat dim
    dt = 0.01

    amp = jax.random.uniform(k_amp, (1, output_size), jnp.float32, 0.5, 1.5)
    omega = jax.random.uniform(k_omega, (1, output_size), jnp.float32, 0.5, 3.0)
    phase = jax.random.uniform(k_phase, (1, output_size), jnp.float32, 0.0, 1.0)

    policy = TraceableTimePolicyPallas(input_size, output_size, amp, omega, phase, dt)

    # dummy observation (ignored by forward, as in the PyTorch module)
    obs = jax.random.normal(jax.random.PRNGKey(1), (input_size,), jnp.float32)

    ok = True

    # --- single-step API path (3 forward() calls, device-resident step) ---
    n_single = 3
    for i in range(n_single):
        act = jax.block_until_ready(policy.forward(obs))
        t_i = jnp.float32(i) * jnp.float32(dt)
        ref = (amp * jnp.sin(omega * t_i + phase)).reshape(output_size)
        ok &= bool(jnp.allclose(act, ref, atol=1e-4, rtol=1e-4))

    # --- batched rollout path (200 steps, transposed lane-dense layout) ---
    T = 200
    acts = jax.block_until_ready(policy.rollout(T))
    steps = jnp.arange(n_single, n_single + T, dtype=jnp.float32).reshape(T, 1)
    t_all = steps * jnp.float32(dt)
    ref_roll = amp * jnp.sin(omega * t_all + phase)          # (T, D)
    ok &= acts.shape == (T, output_size)
    ok &= bool(jnp.allclose(acts, ref_roll, atol=1e-4, rtol=1e-4))

    # time bookkeeping (host mirror, closed form)
    ok &= abs(policy.t_curr - (n_single + T) * dt) < 1e-9

    # device step counter matches host mirror
    ok &= int(jax.device_get(policy._step_dev)[0]) == n_single + T

    assert ok, "mismatch vs reference"
    print("KERNEL_OK")
</pallas_src>

<mosaic_0001>
module attributes {stable_mosaic.version = 11 : i64} {
  func.func @kernel(%arg0: memref<1xi32, #tpu.memory_space<smem>>, %arg1: memref<24x1xf32, #tpu.memory_space<vmem>>, %arg2: memref<8x1xf32, #tpu.memory_space<vmem>>, %arg3: memref<1xi32, #tpu.memory_space<smem>>) attributes {dimension_semantics = [], scalar_prefetch = 0 : i64, scratch_operands = 0 : i64, tpu.core_type = #tpu.core_type<tc>} {
    %c0 = arith.constant 0 : index
    %c0_0 = arith.constant 0 : index
    %0 = vector.load %arg1[%c0, %c0_0] : memref<24x1xf32, #tpu.memory_space<vmem>>, vector<8x1xf32>
    %c8 = arith.constant 8 : index
    %c0_1 = arith.constant 0 : index
    %1 = vector.load %arg1[%c8, %c0_1] : memref<24x1xf32, #tpu.memory_space<vmem>>, vector<8x1xf32>
    %c16 = arith.constant 16 : index
    %c0_2 = arith.constant 0 : index
    %2 = vector.load %arg1[%c16, %c0_2] : memref<24x1xf32, #tpu.memory_space<vmem>>, vector<8x1xf32>
    %c0_3 = arith.constant 0 : index
    %3 = memref.load %arg0[%c0_3] : memref<1xi32, #tpu.memory_space<smem>>
    %4 = arith.sitofp %3 : i32 to f32
    %5 = vector.broadcast %4 : f32 to vector<8x1xf32>
    %6 = arith.mulf %1, %5 : vector<8x1xf32>
    %7 = arith.addf %6, %2 : vector<8x1xf32>
    %8 = math.sin %7 : vector<8x1xf32>
    %9 = arith.mulf %0, %8 : vector<8x1xf32>
    %c0_4 = arith.constant 0 : index
    %c0_5 = arith.constant 0 : index
    %10 = vector.load %arg2[%c0_4, %c0_5] : memref<8x1xf32, #tpu.memory_space<vmem>>, vector<8x1xf32>
    tpu.vector_store %arg2[%c0_4, %c0_5], %9 {strides = array<i32>} : memref<8x1xf32, #tpu.memory_space<vmem>>, vector<8x1xf32>,
    %c0_6 = arith.constant 0 : index
    %11 = memref.load %arg0[%c0_6] : memref<1xi32, #tpu.memory_space<smem>>
    %c1_i32 = arith.constant 1 : i32
    %12 = arith.addi %11, %c1_i32 : i32
    %c0_7 = arith.constant 0 : index
    %13 = memref.load %arg3[%c0_7] : memref<1xi32, #tpu.memory_space<smem>>
    memref.store %12, %arg3[%c0_7] : memref<1xi32, #tpu.memory_space<smem>>
    return
  }
}

</mosaic_0001>

<llo_original>
// kernel: fwd.1
$region0: #{fwd.1}
  #allocation0 [shape = 'u32[]', space=smem, size = 0x4, offset = 0x4, fixed_abs, tag = 'smem constant byte address 0x4 - core index']
  #allocation1 [shape = 'u32[144,128]{1,0:T(1,128)}', space=vmem, size = 0x12000, scoped, tag = 'internal scratch']
  #allocation2 [shape = 's32[1]{0:T(128)S(6)}', space=smem, size = 0x200, scoped, tag = 'scoped memory for fwd.1']
  %s0 = inlined_call_operand.<no memory space> [shape: s32[1], index: 0, kind: input, shape index: {}]
  %s1 = inlined_call_operand.vmem [shape: f32[24,1], index: 1, kind: input, shape index: {}]
  %s2 = inlined_call_operand.vmem [shape: f32[8,1], index: 2, kind: output, shape index: {0}]
  %s3 = inlined_call_operand.hbm [shape: s32[1], index: 3, kind: output, shape index: {1}]
  %4 = xla_tuple %s2, %s3
  %s5 = sld [smem:[#allocation0]]
  $region26: #{fwd.1} parent=0
    _
  %s7 = ssub.s32 1, %s5
  %s8 = scalar_select 0, %s7, %s5
  %9 = sst [smem:[#allocation2]] %s0
  $region1: #{fwd.1} parent=0
    #allocation3 [shape = 'u8[512]{0}', space=smem, size = 0x200, scoped, tag = 'output window, operand 1, single buffered']
    #allocation4 [shape = 's32[1]{0}', space=sflag, size = 0x4, scoped, tag = 'scoped memory for fwd.1']
    %10 = vsyncpa [#allocation4], 0
    // Predicated region
    $region2: #{fwd.1} parent=1 // pred_check
      _
    $region3: #{fwd.1} parent=1 // pred_check_branch
      %12 = sbr.rel (0) target = $region5
    $region4: #{fwd.1} parent=1 // pred_region
      _
    $region5: #{fwd.1} parent=1 // pred_fallthru
      _
    // Predicated region
    $region6: #{fwd.1} parent=1 // pred_check
      _
    $region7: #{fwd.1} parent=1 // pred_check_branch
      %14 = sbr.rel (0) target = $region9
    $region8: #{fwd.1} parent=1 // pred_region
      _
    $region9: #{fwd.1} parent=1 // pred_fallthru
      _
    %v15 = vld [vmem:[%s1] sm:$0xff]
    %v16 = vld [vmem:[%s1 + $0x8] sm:$0xff]
    %v17 = vld [vmem:[%s1 + $0x10] sm:$0xff]
    %s18 = sld [smem:[#allocation2]]
    %s19 = scvt.s32.f32 %s18
    %v20 = vstv %s19
    %v21 = vmul.f32 %v16, %v20
    %v22 = vadd.f32 %v21, %v17
    %v23 = vand.u32 2147483647, %v22
    %vm24 = vcmp.le.f32.partialorder %v23, 0.7853982
    %vm25 = vcmp.lt.s32.totalorder %v22, 0
    %v26 = vand.u32 %v22, 2139095040
    %v27 = vshrl.u32 %v26, 23
    %v28 = vsub.s32 %v27, 127
    %v29 = vand.u32 2147483647, %v22
    %v30 = vand.u32 %v29, 8388607
    %v31 = vor.u32 %v30, 8388608
    %v32 = vsub.s32 0, %v31
    %v33 = vadd.s32 %v28, 1
    %vm34 = vcmp.gt.s32.totalorder %v33, 0
    %v35 = vsel %vm34, %v33, 0
    %v36 = vshrl.u32 %v35, 5
    %v37 = vand.u32 %v35, 31
    %v38 = vsub.s32 32, %v37
    %v39 = vshrl.u32 683565275, %v38
    %v40 = vshll.u32 683565275, %v37
    %v41 = vshrl.u32 2475754826, %v38
    %v42 = vor.u32 %v40, %v41
    %v43 = vshll.u32 2475754826, %v37
    %v44 = vshrl.u32 2131351028, %v38
    %v45 = vor.u32 %v43, %v44
    %v46 = vshll.u32 2131351028, %v37
    %v47 = vshrl.u32 2102212464, %v38
    %v48 = vor.u32 %v46, %v47
    %v49 = vshll.u32 2102212464, %v37
    %v50 = vshrl.u32 920167782, %v38
    %v51 = vor.u32 %v49, %v50
    %v52 = vshll.u32 920167782, %v37
    %v53 = vshrl.u32 1326507024, %v38
    %v54 = vor.u32 %v52, %v53
    %vm55 = vcmp.lt.s32.totalorder %v36, 1
    %vm56 = vcmp.lt.s32.totalorder %v36, 2
    %vm57 = vcmp.lt.s32.totalorder %v36, 3
    %vm58 = vcmp.lt.s32.totalorder %v36, 4
    %v59 = vsel %vm55, %v39, %v42
    %v60 = vsel %vm58, %v48, 2102212464
    %v61 = vsel %vm57, %v45, %v60
    %v62 = vsel %vm56, %v59, %v61
    %v63 = vsel %vm55, %v42, %v45
    %v64 = vsel %vm58, %v51, 920167782
    %v65 = vsel %vm57, %v48, %v64
    %v66 = vsel %vm56, %v63, %v65
    %v67 = vsel %vm55, %v45, %v48
    %v68 = vsel %vm58, %v54, 1326507024
    %v69 = vsel %vm57, %v51, %v68
    %v70 = vsel %vm56, %v67, %v69
    %v71 = vshll.u32 %v31, 8
    %v72 = vmul.u32.u64.compose %v71, %v70
    %v73 = vextract.low.u32 %v72
    %v74 = vextract.high.u32 %v72
    %v75 = vmul.u32.u64.compose %v71, %v66
    %v76 = vextract.low.u32 %v75
    %v77 = vextract.high.u32 %v75
    %v78 = vmul.u32 %v71, %v62
    %v79 = vadd.s32 %v74, %v76
    %vm80 = vc.u32 %v74, %v76
    %v81 = vadd.s32 %v77, 1
    %v82 = vsel %vm80, %v81, %v77
    %v83 = vadd.s32 %v78, %v82
    %v84 = vadd.s32 %v83, 536870912
    %v85 = vshrl.u32 %v84, 30
    %v86 = vshll.u32 %v85, 30
    %v87 = vsub.s32 %v83, %v86
    %vm88 = vcmp.lt.s32.totalorder %v87, 0
    %v89 = vsub.s32 0, %v87
    %v90 = vsel %vm88, %v89, %v87
    %v91 = vclz %v90
    %v92 = vsub.s32 %v91, 2
    %vm93 = vcmp.gt.s32.totalorder 0, %v92
    %v94 = vsel %vm93, 0, %v92
    %v95 = vsub.s32 32, %v94
    %v96 = vshll.u32 %v87, %v94
    %v97 = vshrl.u32 %v79, %v95
    %v98 = vor.u32 %v96, %v97
    %v99 = vsub.s32 4294967266, %v94
    %v100 = vadd.s32 %v99, 127
    %v101 = vshll.u32 %v100, 23
    %v102 = vor.u32 4788187, %v101
    %v103 = vand.u32 2147483647, %v102
    %v105 = vcvt.s32.f32 %v98
    %v106 = vmul.f32 %v105, %v103
    %v107 = vxor.u32 %v106, 2147483648
    %v108 = vsel %vm25, %v107, %v106
    %v109 = vsub.s32 4, %v85
    %v110 = vsel %vm25, %v109, %v85
    %v111 = vsel %vm24, %v22, %v108
    %v112 = vsel %vm24, 0, %v110
    %v113 = vcosq.f32.pop %v111
    %v114 = vsinq.f32.pop %v111
    %vm115 = vweird.f32 %v22
    %v116 = vadd.s32 %v112, 3
    %v117 = vand.u32 %v116, 3
    %vm118 = vcmp.lt.s32.totalorder %v117, 2
    %vm119 = vcmp.eq.s32.totalorder %v117, 0
    %v120 = vxor.u32 %v114, 2147483648
    %v121 = vsel %vm119, %v113, %v120
    %vm122 = vcmp.eq.s32.totalorder %v117, 2
    %v123 = vxor.u32 %v113, 2147483648
    %v124 = vsel %vm122, %v123, %v114
    %v125 = vsel %vm118, %v121, %v124
    %v126 = vsel %vm115, nan, %v125
    %v127 = vmul.f32 %v15, %v126
    %vm128 = vcmask 7168
    %129 = vst.msk [vmem:[%s2] sm:$0xff] %vm128, %v127
    %s130 = sld [smem:[#allocation2]]
    %s131 = sadd.s32 %s130, 1
    %s132 = scalar_lea.smem [#allocation3], 0
    %133 = sst [smem:[%s132]] %s131
    // Predicated region
    $region10: #{fwd.1} parent=1 // pred_check
      _
    $region11: #{fwd.1} parent=1 // pred_check_branch
      %135 = sbr.rel (0) target = $region13
    $region12: #{fwd.1} parent=1 // pred_region
      _
    $region13: #{fwd.1} parent=1 // pred_fallthru
      _
    // Predicated region
    $region14: #{fwd.1} parent=1 // pred_check
      _
    $region15: #{fwd.1} parent=1 // pred_check_branch
      %137 = sbr.rel (0) target = $region17
    $region16: #{fwd.1} parent=1 // pred_region
      %s139 = ssub.s32 16, 16
      %140 = vsyncadd [#allocation4], %s139
      %143 = dma.smem_to_hbm [#allocation3], 16, %s3, [#allocation4]
    $region17: #{fwd.1} parent=1 // pred_fallthru
      _
    // Predicated region
    $region18: #{fwd.1} parent=1 // pred_check
      _
    $region19: #{fwd.1} parent=1 // pred_check_branch
      %145 = sbr.rel (0) target = $region21
    $region20: #{fwd.1} parent=1 // pred_region
      _
    $region21: #{fwd.1} parent=1 // pred_fallthru
      _
    // Predicated region
    $region22: #{fwd.1} parent=1 // pred_check
      _
    $region23: #{fwd.1} parent=1 // pred_check_branch
      %147 = sbr.rel (0) target = $region25
    $region24: #{fwd.1} parent=1 // pred_region
      %148 = dma.done [#allocation4], 16
    $region25: #{fwd.1} parent=1 // pred_fallthru
      _
    %149 = sfence
    %150 = vsyncpa [#allocation4], 1

</llo_original>
